<compile_context>
chip_gen: v6e
topology: v6e:2x2x1
jax: 0.10.0
libtpu: 0.0.40
codegen_flags: <defaults>
</compile_context>

<pallas_src>
import jax
import jax.numpy as jnp
import numpy as np
from jax.experimental import pallas as pl
from jax.experimental.pallas import tpu as pltpu

# Model hyperparameters (synthetic, deterministic — mirrors the module's __init__).
N_CAT = 3                  # len(categorical_cols_)
N_CONT = 4                 # len(continuous_cols_)
N_FEAT = N_CAT + N_CONT
EMB_DIM = 10               # embedding_dim default
VOCABS = (7, 5, 11)        # len(df_train[col].unique()) per categorical column
TOTAL_V = sum(VOCABS)      # 23
OFFSETS = tuple(int(o) for o in np.concatenate([[0], np.cumsum(VOCABS)[:-1]]))
D = N_CAT * EMB_DIM + N_CONT
LANES = 128

# SMEM parameter layout: [ per-index scores (TOTAL_V) | w_cont (N_CONT) | bias ]
P_WCONT = TOTAL_V
P_BIAS = TOTAL_V + N_CONT
P_LEN = TOTAL_V + N_CONT + 1


def ctr_kernel(params_ref, x_ref, o_ref):
    """One batch tile; batch lies on (sublane, lane) of the last two dims.

    params_ref: SMEM f32[P_LEN]   folded scores, continuous weights, bias
    x_ref:      VMEM f32[N_FEAT, TR, 128]
                  rows 0..N_CAT-1 : categorical indices (exact small ints as f32)
                  rows N_CAT..    : continuous features
    o_ref:      VMEM f32[TR, 128] sigmoid(logits), fully dense store
    """
    tr = o_ref.shape[0]

    # Seed the accumulator with the linear bias (scalar splat from SMEM).
    acc = jnp.zeros((tr, LANES), jnp.float32) + params_ref[P_BIAS]

    # Continuous features: scalar-weight multiply-add per feature row (VPU).
    for j in range(N_CONT):
        acc = acc + x_ref[N_CAT + j] * params_ref[P_WCONT + j]

    # Categorical features: each embedding row collapsed to one scalar score
    # (single output neuron).  Gather via an unrolled compare/select scan over
    # each tiny vocabulary — pure VPU, no iota, no cross-lane relayout.
    for i in range(N_CAT):
        idx = x_ref[i]                                   # (tr, 128), exact integer-valued f32
        for v in range(VOCABS[i]):
            acc = acc + jnp.where(idx == float(v), params_ref[OFFSETS[i] + v], 0.0)

    o_ref[...] = jax.nn.sigmoid(acc)


def ctr_forward(x, emb_tables, weight, bias):
    """x: [B, N_CAT + N_CONT] f32 (indices stored as floats); weight: [1, D]; bias: [1]."""
    B = x.shape[0]
    w = weight.astype(jnp.float32)

    # --- wrapper-side algebraic folding (mathematically identical) ---
    # s_i[v] = E_i[v, :] @ W[0, i*EMB : (i+1)*EMB]   (one scalar per vocab entry)
    s_parts = [
        emb_tables[i].astype(jnp.float32) @ w[0, i * EMB_DIM:(i + 1) * EMB_DIM]
        for i in range(N_CAT)
    ]
    params = jnp.concatenate(
        s_parts + [w[0, N_CAT * EMB_DIM:], bias.astype(jnp.float32).reshape(1)]
    )                                                    # [P_LEN] f32 -> SMEM

    # --- batch-on-(sublane, lane) layout + tile selection ---
    rows = -(-B // LANES)                                # ceil(B / 128)
    if rows <= 8:
        tile_rows, num_tiles = rows, 1                   # single tile (block == full dim)
    else:
        tile_rows = 32                                   # up to 4096 batch elems / tile
        while tile_rows > 8 and rows < 2 * tile_rows:    # keep >=2 tiles for megacore
            tile_rows //= 2
        num_tiles = -(-rows // tile_rows)
    rows_pad = tile_rows * num_tiles
    B_pad = rows_pad * LANES

    # Single fused input: [N_FEAT, B] -> pad batch -> [N_FEAT, rows_pad, 128].
    # (Indices stay f32: equality against small integer constants is exact;
    #  padded rows read index 0 — valid — and are sliced off afterwards.)
    xt = jnp.transpose(x.astype(jnp.float32))            # [N_FEAT, B]
    xt = jnp.pad(xt, ((0, 0), (0, B_pad - B)))
    xt = xt.reshape(N_FEAT, rows_pad, LANES)

    out = pl.pallas_call(
        ctr_kernel,
        out_shape=jax.ShapeDtypeStruct((rows_pad, LANES), jnp.float32),
        grid=(num_tiles,),
        in_specs=[
            pl.BlockSpec(memory_space=pltpu.MemorySpace.SMEM),             # params (tiny, resident)
            pl.BlockSpec((N_FEAT, tile_rows, LANES), lambda i: (0, i, 0)),  # one DMA / step
        ],
        out_specs=pl.BlockSpec((tile_rows, LANES), lambda i: (i, 0)),       # dense stores
        compiler_params=pltpu.CompilerParams(
            dimension_semantics=("parallel",)),
    )(params, xt)

    return out.reshape(B_pad)[:B].reshape(B, 1)


def ctr_reference(x, emb_tables, weight, bias):
    """Pure-JAX reference matching the PyTorch forward."""
    cat_parts = []
    for i, tbl in enumerate(emb_tables):
        idx = x[:, i].astype(jnp.int32)
        cat_parts.append(jnp.take(tbl, idx, axis=0))      # [B, EMB_DIM]
    cat = jnp.concatenate(cat_parts, axis=1)              # [B, N_CAT*EMB_DIM]
    cont = x[:, N_CAT:]                                   # [B, N_CONT]
    feats = jnp.concatenate([cat, cont], axis=1)          # [B, D]
    logits = feats @ weight.T + bias                      # [B, 1]
    return jax.nn.sigmoid(logits)


def _make_inputs(key, batch):
    k_idx, k_cont = jax.random.split(key)
    idx_keys = jax.random.split(k_idx, N_CAT)
    idx_cols = [
        jax.random.randint(idx_keys[i], (batch, 1), 0, VOCABS[i]).astype(jnp.float32)
        for i in range(N_CAT)
    ]
    cont_cols = jax.random.normal(k_cont, (batch, N_CONT), dtype=jnp.float32)
    return jnp.concatenate(idx_cols + [cont_cols], axis=1)   # [batch, N_FEAT]


if __name__ == "__main__":
    key = jax.random.PRNGKey(0)
    k_emb, k_w, k_b, k_x1, k_x2 = jax.random.split(key, 5)

    # Deterministic parameter init (PyTorch-like: embeddings ~ N(0,1),
    # linear ~ U(-1/sqrt(D), 1/sqrt(D))).
    emb_keys = jax.random.split(k_emb, N_CAT)
    emb_tables = tuple(
        jax.random.normal(emb_keys[i], (VOCABS[i], EMB_DIM), dtype=jnp.float32)
        for i in range(N_CAT)
    )
    bound = 1.0 / np.sqrt(D)
    weight = jax.random.uniform(k_w, (1, D), minval=-bound, maxval=bound,
                                dtype=jnp.float32)
    bias = jax.random.uniform(k_b, (1,), minval=-bound, maxval=bound,
                              dtype=jnp.float32)

    # Small example matching the module (batch=2, 3 index cols + 4 cont cols).
    x_small = _make_inputs(k_x1, 2)
    out = jax.block_until_ready(ctr_forward(x_small, emb_tables, weight, bias))
    ref = ctr_reference(x_small, emb_tables, weight, bias)
    np.testing.assert_allclose(np.asarray(out), np.asarray(ref),
                               rtol=1e-5, atol=1e-5)

    # Larger batch exercising the multi-tile (padded, 2-tile) path.
    x_big = _make_inputs(k_x2, 2000)
    out_big = jax.block_until_ready(ctr_forward(x_big, emb_tables, weight, bias))
    ref_big = ctr_reference(x_big, emb_tables, weight, bias)
    np.testing.assert_allclose(np.asarray(out_big), np.asarray(ref_big),
                               rtol=1e-5, atol=1e-5)

    print("KERNEL_OK")
</pallas_src>

<mosaic_0001>
module attributes {stable_mosaic.version = 11 : i64} {
  func.func @ctr_kernel(%arg0: i32, %arg1: memref<28xf32, #tpu.memory_space<smem>>, %arg2: memref<7x1x128xf32, #tpu.memory_space<vmem>>, %arg3: memref<1x128xf32, #tpu.memory_space<vmem>>) attributes {dimension_semantics = [#tpu.dimension_semantics<parallel>], iteration_bounds = array<i64: 1>, scalar_prefetch = 0 : i64, scratch_operands = 0 : i64, tpu.core_type = #tpu.core_type<tc>, window_params = [{transform_indices = @transform_0, window_bounds = array<i64: 28>}, {transform_indices = @transform_1, window_bounds = array<i64: 7, 1, 128>}, {transform_indices = @transform_2, window_bounds = array<i64: 1, 128>}]} {
    %cst = arith.constant 0.000000e+00 : f32
    %0 = vector.broadcast %cst : f32 to vector<1x128xf32>
    %c27 = arith.constant 27 : index
    %1 = memref.load %arg1[%c27] : memref<28xf32, #tpu.memory_space<smem>>
    %2 = vector.broadcast %1 : f32 to vector<1x128xf32>
    %3 = arith.addf %0, %2 : vector<1x128xf32>
    %c3 = arith.constant 3 : index
    %c0 = arith.constant 0 : index
    %c0_0 = arith.constant 0 : index
    %4 = vector.load %arg2[%c3, %c0, %c0_0] : memref<7x1x128xf32, #tpu.memory_space<vmem>>, vector<1x1x128xf32>
    %5 = vector.shape_cast %4 : vector<1x1x128xf32> to vector<1x128xf32>
    %c23 = arith.constant 23 : index
    %6 = memref.load %arg1[%c23] : memref<28xf32, #tpu.memory_space<smem>>
    %7 = vector.broadcast %6 : f32 to vector<1x128xf32>
    %8 = arith.mulf %5, %7 : vector<1x128xf32>
    %9 = arith.addf %3, %8 : vector<1x128xf32>
    %c4 = arith.constant 4 : index
    %c0_1 = arith.constant 0 : index
    %c0_2 = arith.constant 0 : index
    %10 = vector.load %arg2[%c4, %c0_1, %c0_2] : memref<7x1x128xf32, #tpu.memory_space<vmem>>, vector<1x1x128xf32>
    %11 = vector.shape_cast %10 : vector<1x1x128xf32> to vector<1x128xf32>
    %c24 = arith.constant 24 : index
    %12 = memref.load %arg1[%c24] : memref<28xf32, #tpu.memory_space<smem>>
    %13 = vector.broadcast %12 : f32 to vector<1x128xf32>
    %14 = arith.mulf %11, %13 : vector<1x128xf32>
    %15 = arith.addf %9, %14 : vector<1x128xf32>
    %c5 = arith.constant 5 : index
    %c0_3 = arith.constant 0 : index
    %c0_4 = arith.constant 0 : index
    %16 = vector.load %arg2[%c5, %c0_3, %c0_4] : memref<7x1x128xf32, #tpu.memory_space<vmem>>, vector<1x1x128xf32>
    %17 = vector.shape_cast %16 : vector<1x1x128xf32> to vector<1x128xf32>
    %c25 = arith.constant 25 : index
    %18 = memref.load %arg1[%c25] : memref<28xf32, #tpu.memory_space<smem>>
    %19 = vector.broadcast %18 : f32 to vector<1x128xf32>
    %20 = arith.mulf %17, %19 : vector<1x128xf32>
    %21 = arith.addf %15, %20 : vector<1x128xf32>
    %c6 = arith.constant 6 : index
    %c0_5 = arith.constant 0 : index
    %c0_6 = arith.constant 0 : index
    %22 = vector.load %arg2[%c6, %c0_5, %c0_6] : memref<7x1x128xf32, #tpu.memory_space<vmem>>, vector<1x1x128xf32>
    %23 = vector.shape_cast %22 : vector<1x1x128xf32> to vector<1x128xf32>
    %c26 = arith.constant 26 : index
    %24 = memref.load %arg1[%c26] : memref<28xf32, #tpu.memory_space<smem>>
    %25 = vector.broadcast %24 : f32 to vector<1x128xf32>
    %26 = arith.mulf %23, %25 : vector<1x128xf32>
    %27 = arith.addf %21, %26 : vector<1x128xf32>
    %c0_7 = arith.constant 0 : index
    %c0_8 = arith.constant 0 : index
    %c0_9 = arith.constant 0 : index
    %28 = vector.load %arg2[%c0_7, %c0_8, %c0_9] : memref<7x1x128xf32, #tpu.memory_space<vmem>>, vector<1x1x128xf32>
    %29 = vector.shape_cast %28 : vector<1x1x128xf32> to vector<1x128xf32>
    %cst_10 = arith.constant 0.000000e+00 : f32
    %30 = vector.broadcast %cst_10 : f32 to vector<1x128xf32>
    %31 = arith.cmpf oeq, %29, %30 : vector<1x128xf32>
    %c0_11 = arith.constant 0 : index
    %32 = memref.load %arg1[%c0_11] : memref<28xf32, #tpu.memory_space<smem>>
    %cst_12 = arith.constant 0.000000e+00 : f32
    %33 = vector.broadcast %32 : f32 to vector<1x128xf32>
    %34 = vector.broadcast %cst_12 : f32 to vector<1x128xf32>
    %35 = arith.select %31, %33, %34 : vector<1x128xi1>, vector<1x128xf32>
    %36 = arith.addf %27, %35 : vector<1x128xf32>
    %cst_13 = arith.constant 1.000000e+00 : f32
    %37 = vector.broadcast %cst_13 : f32 to vector<1x128xf32>
    %38 = arith.cmpf oeq, %29, %37 : vector<1x128xf32>
    %c1 = arith.constant 1 : index
    %39 = memref.load %arg1[%c1] : memref<28xf32, #tpu.memory_space<smem>>
    %cst_14 = arith.constant 0.000000e+00 : f32
    %40 = vector.broadcast %39 : f32 to vector<1x128xf32>
    %41 = vector.broadcast %cst_14 : f32 to vector<1x128xf32>
    %42 = arith.select %38, %40, %41 : vector<1x128xi1>, vector<1x128xf32>
    %43 = arith.addf %36, %42 : vector<1x128xf32>
    %cst_15 = arith.constant 2.000000e+00 : f32
    %44 = vector.broadcast %cst_15 : f32 to vector<1x128xf32>
    %45 = arith.cmpf oeq, %29, %44 : vector<1x128xf32>
    %c2 = arith.constant 2 : index
    %46 = memref.load %arg1[%c2] : memref<28xf32, #tpu.memory_space<smem>>
    %cst_16 = arith.constant 0.000000e+00 : f32
    %47 = vector.broadcast %46 : f32 to vector<1x128xf32>
    %48 = vector.broadcast %cst_16 : f32 to vector<1x128xf32>
    %49 = arith.select %45, %47, %48 : vector<1x128xi1>, vector<1x128xf32>
    %50 = arith.addf %43, %49 : vector<1x128xf32>
    %cst_17 = arith.constant 3.000000e+00 : f32
    %51 = vector.broadcast %cst_17 : f32 to vector<1x128xf32>
    %52 = arith.cmpf oeq, %29, %51 : vector<1x128xf32>
    %c3_18 = arith.constant 3 : index
    %53 = memref.load %arg1[%c3_18] : memref<28xf32, #tpu.memory_space<smem>>
    %cst_19 = arith.constant 0.000000e+00 : f32
    %54 = vector.broadcast %53 : f32 to vector<1x128xf32>
    %55 = vector.broadcast %cst_19 : f32 to vector<1x128xf32>
    %56 = arith.select %52, %54, %55 : vector<1x128xi1>, vector<1x128xf32>
    %57 = arith.addf %50, %56 : vector<1x128xf32>
    %cst_20 = arith.constant 4.000000e+00 : f32
    %58 = vector.broadcast %cst_20 : f32 to vector<1x128xf32>
    %59 = arith.cmpf oeq, %29, %58 : vector<1x128xf32>
    %c4_21 = arith.constant 4 : index
    %60 = memref.load %arg1[%c4_21] : memref<28xf32, #tpu.memory_space<smem>>
    %cst_22 = arith.constant 0.000000e+00 : f32
    %61 = vector.broadcast %60 : f32 to vector<1x128xf32>
    %62 = vector.broadcast %cst_22 : f32 to vector<1x128xf32>
    %63 = arith.select %59, %61, %62 : vector<1x128xi1>, vector<1x128xf32>
    %64 = arith.addf %57, %63 : vector<1x128xf32>
    %cst_23 = arith.constant 5.000000e+00 : f32
    %65 = vector.broadcast %cst_23 : f32 to vector<1x128xf32>
    %66 = arith.cmpf oeq, %29, %65 : vector<1x128xf32>
    %c5_24 = arith.constant 5 : index
    %67 = memref.load %arg1[%c5_24] : memref<28xf32, #tpu.memory_space<smem>>
    %cst_25 = arith.constant 0.000000e+00 : f32
    %68 = vector.broadcast %67 : f32 to vector<1x128xf32>
    %69 = vector.broadcast %cst_25 : f32 to vector<1x128xf32>
    %70 = arith.select %66, %68, %69 : vector<1x128xi1>, vector<1x128xf32>
    %71 = arith.addf %64, %70 : vector<1x128xf32>
    %cst_26 = arith.constant 6.000000e+00 : f32
    %72 = vector.broadcast %cst_26 : f32 to vector<1x128xf32>
    %73 = arith.cmpf oeq, %29, %72 : vector<1x128xf32>
    %c6_27 = arith.constant 6 : index
    %74 = memref.load %arg1[%c6_27] : memref<28xf32, #tpu.memory_space<smem>>
    %cst_28 = arith.constant 0.000000e+00 : f32
    %75 = vector.broadcast %74 : f32 to vector<1x128xf32>
    %76 = vector.broadcast %cst_28 : f32 to vector<1x128xf32>
    %77 = arith.select %73, %75, %76 : vector<1x128xi1>, vector<1x128xf32>
    %78 = arith.addf %71, %77 : vector<1x128xf32>
    %c1_29 = arith.constant 1 : index
    %c0_30 = arith.constant 0 : index
    %c0_31 = arith.constant 0 : index
    %79 = vector.load %arg2[%c1_29, %c0_30, %c0_31] : memref<7x1x128xf32, #tpu.memory_space<vmem>>, vector<1x1x128xf32>
    %80 = vector.shape_cast %79 : vector<1x1x128xf32> to vector<1x128xf32>
    %cst_32 = arith.constant 0.000000e+00 : f32
    %81 = vector.broadcast %cst_32 : f32 to vector<1x128xf32>
    %82 = arith.cmpf oeq, %80, %81 : vector<1x128xf32>
    %c7 = arith.constant 7 : index
    %83 = memref.load %arg1[%c7] : memref<28xf32, #tpu.memory_space<smem>>
    %cst_33 = arith.constant 0.000000e+00 : f32
    %84 = vector.broadcast %83 : f32 to vector<1x128xf32>
    %85 = vector.broadcast %cst_33 : f32 to vector<1x128xf32>
    %86 = arith.select %82, %84, %85 : vector<1x128xi1>, vector<1x128xf32>
    %87 = arith.addf %78, %86 : vector<1x128xf32>
    %cst_34 = arith.constant 1.000000e+00 : f32
    %88 = vector.broadcast %cst_34 : f32 to vector<1x128xf32>
    %89 = arith.cmpf oeq, %80, %88 : vector<1x128xf32>
    %c8 = arith.constant 8 : index
    %90 = memref.load %arg1[%c8] : memref<28xf32, #tpu.memory_space<smem>>
    %cst_35 = arith.constant 0.000000e+00 : f32
    %91 = vector.broadcast %90 : f32 to vector<1x128xf32>
    %92 = vector.broadcast %cst_35 : f32 to vector<1x128xf32>
    %93 = arith.select %89, %91, %92 : vector<1x128xi1>, vector<1x128xf32>
    %94 = arith.addf %87, %93 : vector<1x128xf32>
    %cst_36 = arith.constant 2.000000e+00 : f32
    %95 = vector.broadcast %cst_36 : f32 to vector<1x128xf32>
    %96 = arith.cmpf oeq, %80, %95 : vector<1x128xf32>
    %c9 = arith.constant 9 : index
    %97 = memref.load %arg1[%c9] : memref<28xf32, #tpu.memory_space<smem>>
    %cst_37 = arith.constant 0.000000e+00 : f32
    %98 = vector.broadcast %97 : f32 to vector<1x128xf32>
    %99 = vector.broadcast %cst_37 : f32 to vector<1x128xf32>
    %100 = arith.select %96, %98, %99 : vector<1x128xi1>, vector<1x128xf32>
    %101 = arith.addf %94, %100 : vector<1x128xf32>
    %cst_38 = arith.constant 3.000000e+00 : f32
    %102 = vector.broadcast %cst_38 : f32 to vector<1x128xf32>
    %103 = arith.cmpf oeq, %80, %102 : vector<1x128xf32>
    %c10 = arith.constant 10 : index
    %104 = memref.load %arg1[%c10] : memref<28xf32, #tpu.memory_space<smem>>
    %cst_39 = arith.constant 0.000000e+00 : f32
    %105 = vector.broadcast %104 : f32 to vector<1x128xf32>
    %106 = vector.broadcast %cst_39 : f32 to vector<1x128xf32>
    %107 = arith.select %103, %105, %106 : vector<1x128xi1>, vector<1x128xf32>
    %108 = arith.addf %101, %107 : vector<1x128xf32>
    %cst_40 = arith.constant 4.000000e+00 : f32
    %109 = vector.broadcast %cst_40 : f32 to vector<1x128xf32>
    %110 = arith.cmpf oeq, %80, %109 : vector<1x128xf32>
    %c11 = arith.constant 11 : index
    %111 = memref.load %arg1[%c11] : memref<28xf32, #tpu.memory_space<smem>>
    %cst_41 = arith.constant 0.000000e+00 : f32
    %112 = vector.broadcast %111 : f32 to vector<1x128xf32>
    %113 = vector.broadcast %cst_41 : f32 to vector<1x128xf32>
    %114 = arith.select %110, %112, %113 : vector<1x128xi1>, vector<1x128xf32>
    %115 = arith.addf %108, %114 : vector<1x128xf32>
    %c2_42 = arith.constant 2 : index
    %c0_43 = arith.constant 0 : index
    %c0_44 = arith.constant 0 : index
    %116 = vector.load %arg2[%c2_42, %c0_43, %c0_44] : memref<7x1x128xf32, #tpu.memory_space<vmem>>, vector<1x1x128xf32>
    %117 = vector.shape_cast %116 : vector<1x1x128xf32> to vector<1x128xf32>
    %cst_45 = arith.constant 0.000000e+00 : f32
    %118 = vector.broadcast %cst_45 : f32 to vector<1x128xf32>
    %119 = arith.cmpf oeq, %117, %118 : vector<1x128xf32>
    %c12 = arith.constant 12 : index
    %120 = memref.load %arg1[%c12] : memref<28xf32, #tpu.memory_space<smem>>
    %cst_46 = arith.constant 0.000000e+00 : f32
    %121 = vector.broadcast %120 : f32 to vector<1x128xf32>
    %122 = vector.broadcast %cst_46 : f32 to vector<1x128xf32>
    %123 = arith.select %119, %121, %122 : vector<1x128xi1>, vector<1x128xf32>
    %124 = arith.addf %115, %123 : vector<1x128xf32>
    %cst_47 = arith.constant 1.000000e+00 : f32
    %125 = vector.broadcast %cst_47 : f32 to vector<1x128xf32>
    %126 = arith.cmpf oeq, %117, %125 : vector<1x128xf32>
    %c13 = arith.constant 13 : index
    %127 = memref.load %arg1[%c13] : memref<28xf32, #tpu.memory_space<smem>>
    %cst_48 = arith.constant 0.000000e+00 : f32
    %128 = vector.broadcast %127 : f32 to vector<1x128xf32>
    %129 = vector.broadcast %cst_48 : f32 to vector<1x128xf32>
    %130 = arith.select %126, %128, %129 : vector<1x128xi1>, vector<1x128xf32>
    %131 = arith.addf %124, %130 : vector<1x128xf32>
    %cst_49 = arith.constant 2.000000e+00 : f32
    %132 = vector.broadcast %cst_49 : f32 to vector<1x128xf32>
    %133 = arith.cmpf oeq, %117, %132 : vector<1x128xf32>
    %c14 = arith.constant 14 : index
    %134 = memref.load %arg1[%c14] : memref<28xf32, #tpu.memory_space<smem>>
    %cst_50 = arith.constant 0.000000e+00 : f32
    %135 = vector.broadcast %134 : f32 to vector<1x128xf32>
    %136 = vector.broadcast %cst_50 : f32 to vector<1x128xf32>
    %137 = arith.select %133, %135, %136 : vector<1x128xi1>, vector<1x128xf32>
    %138 = arith.addf %131, %137 : vector<1x128xf32>
    %cst_51 = arith.constant 3.000000e+00 : f32
    %139 = vector.broadcast %cst_51 : f32 to vector<1x128xf32>
    %140 = arith.cmpf oeq, %117, %139 : vector<1x128xf32>
    %c15 = arith.constant 15 : index
    %141 = memref.load %arg1[%c15] : memref<28xf32, #tpu.memory_space<smem>>
    %cst_52 = arith.constant 0.000000e+00 : f32
    %142 = vector.broadcast %141 : f32 to vector<1x128xf32>
    %143 = vector.broadcast %cst_52 : f32 to vector<1x128xf32>
    %144 = arith.select %140, %142, %143 : vector<1x128xi1>, vector<1x128xf32>
    %145 = arith.addf %138, %144 : vector<1x128xf32>
    %cst_53 = arith.constant 4.000000e+00 : f32
    %146 = vector.broadcast %cst_53 : f32 to vector<1x128xf32>
    %147 = arith.cmpf oeq, %117, %146 : vector<1x128xf32>
    %c16 = arith.constant 16 : index
    %148 = memref.load %arg1[%c16] : memref<28xf32, #tpu.memory_space<smem>>
    %cst_54 = arith.constant 0.000000e+00 : f32
    %149 = vector.broadcast %148 : f32 to vector<1x128xf32>
    %150 = vector.broadcast %cst_54 : f32 to vector<1x128xf32>
    %151 = arith.select %147, %149, %150 : vector<1x128xi1>, vector<1x128xf32>
    %152 = arith.addf %145, %151 : vector<1x128xf32>
    %cst_55 = arith.constant 5.000000e+00 : f32
    %153 = vector.broadcast %cst_55 : f32 to vector<1x128xf32>
    %154 = arith.cmpf oeq, %117, %153 : vector<1x128xf32>
    %c17 = arith.constant 17 : index
    %155 = memref.load %arg1[%c17] : memref<28xf32, #tpu.memory_space<smem>>
    %cst_56 = arith.constant 0.000000e+00 : f32
    %156 = vector.broadcast %155 : f32 to vector<1x128xf32>
    %157 = vector.broadcast %cst_56 : f32 to vector<1x128xf32>
    %158 = arith.select %154, %156, %157 : vector<1x128xi1>, vector<1x128xf32>
    %159 = arith.addf %152, %158 : vector<1x128xf32>
    %cst_57 = arith.constant 6.000000e+00 : f32
    %160 = vector.broadcast %cst_57 : f32 to vector<1x128xf32>
    %161 = arith.cmpf oeq, %117, %160 : vector<1x128xf32>
    %c18 = arith.constant 18 : index
    %162 = memref.load %arg1[%c18] : memref<28xf32, #tpu.memory_space<smem>>
    %cst_58 = arith.constant 0.000000e+00 : f32
    %163 = vector.broadcast %162 : f32 to vector<1x128xf32>
    %164 = vector.broadcast %cst_58 : f32 to vector<1x128xf32>
    %165 = arith.select %161, %163, %164 : vector<1x128xi1>, vector<1x128xf32>
    %166 = arith.addf %159, %165 : vector<1x128xf32>
    %cst_59 = arith.constant 7.000000e+00 : f32
    %167 = vector.broadcast %cst_59 : f32 to vector<1x128xf32>
    %168 = arith.cmpf oeq, %117, %167 : vector<1x128xf32>
    %c19 = arith.constant 19 : index
    %169 = memref.load %arg1[%c19] : memref<28xf32, #tpu.memory_space<smem>>
    %cst_60 = arith.constant 0.000000e+00 : f32
    %170 = vector.broadcast %169 : f32 to vector<1x128xf32>
    %171 = vector.broadcast %cst_60 : f32 to vector<1x128xf32>
    %172 = arith.select %168, %170, %171 : vector<1x128xi1>, vector<1x128xf32>
    %173 = arith.addf %166, %172 : vector<1x128xf32>
    %cst_61 = arith.constant 8.000000e+00 : f32
    %174 = vector.broadcast %cst_61 : f32 to vector<1x128xf32>
    %175 = arith.cmpf oeq, %117, %174 : vector<1x128xf32>
    %c20 = arith.constant 20 : index
    %176 = memref.load %arg1[%c20] : memref<28xf32, #tpu.memory_space<smem>>
    %cst_62 = arith.constant 0.000000e+00 : f32
    %177 = vector.broadcast %176 : f32 to vector<1x128xf32>
    %178 = vector.broadcast %cst_62 : f32 to vector<1x128xf32>
    %179 = arith.select %175, %177, %178 : vector<1x128xi1>, vector<1x128xf32>
    %180 = arith.addf %173, %179 : vector<1x128xf32>
    %cst_63 = arith.constant 9.000000e+00 : f32
    %181 = vector.broadcast %cst_63 : f32 to vector<1x128xf32>
    %182 = arith.cmpf oeq, %117, %181 : vector<1x128xf32>
    %c21 = arith.constant 21 : index
    %183 = memref.load %arg1[%c21] : memref<28xf32, #tpu.memory_space<smem>>
    %cst_64 = arith.constant 0.000000e+00 : f32
    %184 = vector.broadcast %183 : f32 to vector<1x128xf32>
    %185 = vector.broadcast %cst_64 : f32 to vector<1x128xf32>
    %186 = arith.select %182, %184, %185 : vector<1x128xi1>, vector<1x128xf32>
    %187 = arith.addf %180, %186 : vector<1x128xf32>
    %cst_65 = arith.constant 1.000000e+01 : f32
    %188 = vector.broadcast %cst_65 : f32 to vector<1x128xf32>
    %189 = arith.cmpf oeq, %117, %188 : vector<1x128xf32>
    %c22 = arith.constant 22 : index
    %190 = memref.load %arg1[%c22] : memref<28xf32, #tpu.memory_space<smem>>
    %cst_66 = arith.constant 0.000000e+00 : f32
    %191 = vector.broadcast %190 : f32 to vector<1x128xf32>
    %192 = vector.broadcast %cst_66 : f32 to vector<1x128xf32>
    %193 = arith.select %189, %191, %192 : vector<1x128xi1>, vector<1x128xf32>
    %194 = arith.addf %187, %193 : vector<1x128xf32>
    %195 = arith.negf %194 : vector<1x128xf32>
    %196 = math.exp %195 : vector<1x128xf32>
    %cst_67 = arith.constant 1.000000e+00 : f32
    %197 = vector.broadcast %cst_67 : f32 to vector<1x128xf32>
    %198 = arith.addf %197, %196 : vector<1x128xf32>
    %199 = arith.divf %197, %198 : vector<1x128xf32>
    %c0_68 = arith.constant 0 : index
    %c0_69 = arith.constant 0 : index
    %200 = vector.load %arg3[%c0_68, %c0_69] : memref<1x128xf32, #tpu.memory_space<vmem>>, vector<1x128xf32>
    tpu.vector_store %arg3[%c0_68, %c0_69], %199 {strides = array<i32>} : memref<1x128xf32, #tpu.memory_space<vmem>>, vector<1x128xf32>,
    return
  }
  func.func @transform_0(%arg0: i32) -> i32 {
    %c0_i32 = arith.constant 0 : i32
    %c0_i32_0 = arith.constant 0 : i32
    return %c0_i32 : i32
  }
  func.func @transform_1(%arg0: i32) -> (i32, i32, i32) {
    %c0_i32 = arith.constant 0 : i32
    %c0_i32_0 = arith.constant 0 : i32
    %c0_i32_1 = arith.constant 0 : i32
    return %c0_i32, %arg0, %c0_i32_0 : i32, i32, i32
  }
  func.func @transform_2(%arg0: i32) -> (i32, i32) {
    %c0_i32 = arith.constant 0 : i32
    %c0_i32_0 = arith.constant 0 : i32
    return %arg0, %c0_i32 : i32, i32
  }
}

</mosaic_0001>

<llo_original>
// kernel: tpu_custom_call.1
$region0: #{tpu_custom_call.1}
  #allocation0 [shape = 'u32[]', space=smem, size = 0x4, offset = 0x4, fixed_abs, tag = 'smem constant byte address 0x4 - core index']
  #allocation1 [shape = 'u32[144,128]{1,0:T(1,128)}', space=vmem, size = 0x12000, scoped, tag = 'internal scratch']
  %s0 = inlined_call_operand.hbm [shape: f32[28], index: 0, kind: input, shape index: {}]
  %s1 = inlined_call_operand.hbm [shape: f32[7,1,128], index: 1, kind: input, shape index: {}]
  %s2 = inlined_call_operand.hbm [shape: f32[1,128], index: 2, kind: output, shape index: {}]
  %s3 = sld [smem:[#allocation0]]
  $region26: #{tpu_custom_call.1} parent=0
    _
  %s5 = ssub.s32 1, %s3
  %s6 = scalar_select 0, %s5, %s3
  $region1: #{tpu_custom_call.1} parent=0
    #allocation2 [shape = 'u8[512]{0}', space=smem, size = 0x200, scoped, tag = 'input window, operand 0, single buffered']
    #allocation3 [shape = 's32[1]{0}', space=sflag, size = 0x4, scoped, tag = 'scoped memory for tpu_custom_call.1']
    #allocation4 [shape = 's32[1]{0}', space=sflag, size = 0x4, scoped, tag = 'scoped memory for tpu_custom_call.1']
    #allocation5 [shape = 's32[1]{0}', space=sflag, size = 0x4, scoped, tag = 'scoped memory for tpu_custom_call.1']
    #allocation6 [shape = 'u8[3584]{0}', space=vmem, size = 0x1000, scoped, tag = 'input window, operand 1, single buffered']
    #allocation7 [shape = 'u8[512]{0}', space=vmem, size = 0x400, scoped, tag = 'output window, operand 0, single buffered']
    %7 = vsyncpa [#allocation5], 0
    %8 = vsyncpa [#allocation3], 0
    %9 = vsyncpa [#allocation4], 0
    // Predicated region
    $region2: #{tpu_custom_call.1} parent=1 // pred_check
      _
    $region3: #{tpu_custom_call.1} parent=1 // pred_check_branch
      %11 = sbr.rel (0) target = $region5
    $region4: #{tpu_custom_call.1} parent=1 // pred_region
      %s13 = ssub.s32 16, 16
      %14 = vsyncadd [#allocation5], %s13
      %17 = dma.hbm_to_smem %s0, 16, [#allocation2], [#allocation5]
    $region5: #{tpu_custom_call.1} parent=1 // pred_fallthru
      _
    // Predicated region
    $region6: #{tpu_custom_call.1} parent=1 // pred_check
      _
    $region7: #{tpu_custom_call.1} parent=1 // pred_check_branch
      %19 = sbr.rel (0) target = $region9
    $region8: #{tpu_custom_call.1} parent=1 // pred_region
      %s21 = ssub.s32 112, 112
      %22 = vsyncadd [#allocation3], %s21
      %s23 = sshll.u32 [#allocation6], 4
      %s24 = int_to_ptr.vmem [resolvable:$true] %s23
      %29 = dma.hbm_to_vmem [thread:$0]  %s1, 112, %s24, [#allocation3], 16, 16, 1
    $region9: #{tpu_custom_call.1} parent=1 // pred_fallthru
      _
    // Predicated region
    $region10: #{tpu_custom_call.1} parent=1 // pred_check
      _
    $region11: #{tpu_custom_call.1} parent=1 // pred_check_branch
      %31 = sbr.rel (0) target = $region13
    $region12: #{tpu_custom_call.1} parent=1 // pred_region
      %32 = dma.done [#allocation5], 16
    $region13: #{tpu_custom_call.1} parent=1 // pred_fallthru
      _
    // Predicated region
    $region14: #{tpu_custom_call.1} parent=1 // pred_check
      _
    $region15: #{tpu_custom_call.1} parent=1 // pred_check_branch
      %34 = sbr.rel (0) target = $region17
    $region16: #{tpu_custom_call.1} parent=1 // pred_region
      %35 = dma.done [#allocation3], 112
    $region17: #{tpu_custom_call.1} parent=1 // pred_fallthru
      _
    %36 = sfence
    %s37 = sld [smem:[#allocation2 + $0x1b]]
    %v38 = vstv %s37
    %v39 = vadd.f32 %v38, 0.0
    %s40 = scalar_lea.vmem [#allocation6], 3
    %v41 = vld [vmem:[%s40] sm:$0x1]
    %s42 = sld [smem:[#allocation2 + $0x17]]
    %v43 = vstv %s42
    %v44 = vmul.f32 %v41, %v43
    %v45 = vadd.f32 %v39, %v44
    %s46 = scalar_lea.vmem [#allocation6], 4
    %v47 = vld [vmem:[%s46] sm:$0x1]
    %s48 = sld [smem:[#allocation2 + $0x18]]
    %v49 = vstv %s48
    %v50 = vmul.f32 %v47, %v49
    %v51 = vadd.f32 %v45, %v50
    %s52 = scalar_lea.vmem [#allocation6], 5
    %v53 = vld [vmem:[%s52] sm:$0x1]
    %s54 = sld [smem:[#allocation2 + $0x19]]
    %v55 = vstv %s54
    %v56 = vmul.f32 %v53, %v55
    %v57 = vadd.f32 %v51, %v56
    %s58 = scalar_lea.vmem [#allocation6], 6
    %v59 = vld [vmem:[%s58] sm:$0x1]
    %s60 = sld [smem:[#allocation2 + $0x1a]]
    %v61 = vstv %s60
    %v62 = vmul.f32 %v59, %v61
    %v63 = vadd.f32 %v57, %v62
    %v64 = vld [vmem:[#allocation6] sm:$0x1]
    %vm65 = vcmp.eq.f32.partialorder %v64, 0.0
    %s66 = sld [smem:[#allocation2]]
    %v67 = vstv %s66
    %v68 = vsel %vm65, %v67, 0.0
    %v69 = vadd.f32 %v63, %v68
    %vm70 = vcmp.eq.f32.partialorder %v64, 1.0
    %s71 = sld [smem:[#allocation2 + $0x1]]
    %v72 = vstv %s71
    %v73 = vsel %vm70, %v72, 0.0
    %v74 = vadd.f32 %v69, %v73
    %vm75 = vcmp.eq.f32.partialorder %v64, 2.0
    %s76 = sld [smem:[#allocation2 + $0x2]]
    %v77 = vstv %s76
    %v78 = vsel %vm75, %v77, 0.0
    %v79 = vadd.f32 %v74, %v78
    %vm80 = vcmp.eq.f32.partialorder %v64, 3.0
    %s81 = sld [smem:[#allocation2 + $0x3]]
    %v82 = vstv %s81
    %v83 = vsel %vm80, %v82, 0.0
    %v84 = vadd.f32 %v79, %v83
    %vm85 = vcmp.eq.f32.partialorder %v64, 4.0
    %s86 = sld [smem:[#allocation2 + $0x4]]
    %v87 = vstv %s86
    %v88 = vsel %vm85, %v87, 0.0
    %v89 = vadd.f32 %v84, %v88
    %vm90 = vcmp.eq.f32.partialorder %v64, 5.0
    %s91 = sld [smem:[#allocation2 + $0x5]]
    %v92 = vstv %s91
    %v93 = vsel %vm90, %v92, 0.0
    %v94 = vadd.f32 %v89, %v93
    %vm95 = vcmp.eq.f32.partialorder %v64, 6.0
    %s96 = sld [smem:[#allocation2 + $0x6]]
    %v97 = vstv %s96
    %v98 = vsel %vm95, %v97, 0.0
    %v99 = vadd.f32 %v94, %v98
    %s100 = scalar_lea.vmem [#allocation6], 1
    %v101 = vld [vmem:[%s100] sm:$0x1]
    %vm102 = vcmp.eq.f32.partialorder %v101, 0.0
    %s103 = sld [smem:[#allocation2 + $0x7]]
    %v104 = vstv %s103
    %v105 = vsel %vm102, %v104, 0.0
    %v106 = vadd.f32 %v99, %v105
    %vm107 = vcmp.eq.f32.partialorder %v101, 1.0
    %s108 = sld [smem:[#allocation2 + $0x8]]
    %v109 = vstv %s108
    %v110 = vsel %vm107, %v109, 0.0
    %v111 = vadd.f32 %v106, %v110
    %vm112 = vcmp.eq.f32.partialorder %v101, 2.0
    %s113 = sld [smem:[#allocation2 + $0x9]]
    %v114 = vstv %s113
    %v115 = vsel %vm112, %v114, 0.0
    %v116 = vadd.f32 %v111, %v115
    %vm117 = vcmp.eq.f32.partialorder %v101, 3.0
    %s118 = sld [smem:[#allocation2 + $0xa]]
    %v119 = vstv %s118
    %v120 = vsel %vm117, %v119, 0.0
    %v121 = vadd.f32 %v116, %v120
    %vm122 = vcmp.eq.f32.partialorder %v101, 4.0
    %s123 = sld [smem:[#allocation2 + $0xb]]
    %v124 = vstv %s123
    %v125 = vsel %vm122, %v124, 0.0
    %v126 = vadd.f32 %v121, %v125
    %s127 = scalar_lea.vmem [#allocation6], 2
    %v128 = vld [vmem:[%s127] sm:$0x1]
    %vm129 = vcmp.eq.f32.partialorder %v128, 0.0
    %s130 = sld [smem:[#allocation2 + $0xc]]
    %v131 = vstv %s130
    %v132 = vsel %vm129, %v131, 0.0
    %v133 = vadd.f32 %v126, %v132
    %vm134 = vcmp.eq.f32.partialorder %v128, 1.0
    %s135 = sld [smem:[#allocation2 + $0xd]]
    %v136 = vstv %s135
    %v137 = vsel %vm134, %v136, 0.0
    %v138 = vadd.f32 %v133, %v137
    %vm139 = vcmp.eq.f32.partialorder %v128, 2.0
    %s140 = sld [smem:[#allocation2 + $0xe]]
    %v141 = vstv %s140
    %v142 = vsel %vm139, %v141, 0.0
    %v143 = vadd.f32 %v138, %v142
    %vm144 = vcmp.eq.f32.partialorder %v128, 3.0
    %s145 = sld [smem:[#allocation2 + $0xf]]
    %v146 = vstv %s145
    %v147 = vsel %vm144, %v146, 0.0
    %v148 = vadd.f32 %v143, %v147
    %vm149 = vcmp.eq.f32.partialorder %v128, 4.0
    %s150 = sld [smem:[#allocation2 + $0x10]]
    %v151 = vstv %s150
    %v152 = vsel %vm149, %v151, 0.0
    %v153 = vadd.f32 %v148, %v152
    %vm154 = vcmp.eq.f32.partialorder %v128, 5.0
    %s155 = sld [smem:[#allocation2 + $0x11]]
    %v156 = vstv %s155
    %v157 = vsel %vm154, %v156, 0.0
    %v158 = vadd.f32 %v153, %v157
    %vm159 = vcmp.eq.f32.partialorder %v128, 6.0
    %s160 = sld [smem:[#allocation2 + $0x12]]
    %v161 = vstv %s160
    %v162 = vsel %vm159, %v161, 0.0
    %v163 = vadd.f32 %v158, %v162
    %vm164 = vcmp.eq.f32.partialorder %v128, 7.0
    %s165 = sld [smem:[#allocation2 + $0x13]]
    %v166 = vstv %s165
    %v167 = vsel %vm164, %v166, 0.0
    %v168 = vadd.f32 %v163, %v167
    %vm169 = vcmp.eq.f32.partialorder %v128, 8.0
    %s170 = sld [smem:[#allocation2 + $0x14]]
    %v171 = vstv %s170
    %v172 = vsel %vm169, %v171, 0.0
    %v173 = vadd.f32 %v168, %v172
    %vm174 = vcmp.eq.f32.partialorder %v128, 9.0
    %s175 = sld [smem:[#allocation2 + $0x15]]
    %v176 = vstv %s175
    %v177 = vsel %vm174, %v176, 0.0
    %v178 = vadd.f32 %v173, %v177
    %vm179 = vcmp.eq.f32.partialorder %v128, 10.0
    %s180 = sld [smem:[#allocation2 + $0x16]]
    %v181 = vstv %s180
    %v182 = vsel %vm179, %v181, 0.0
    %v183 = vadd.f32 %v178, %v182
    %v184 = vxor.u32 %v183, 2147483648
    %v185 = vmul.f32 %v184, 1.442695
    %v186 = vpow.pop %v185
    %v187 = vadd.f32 %v186, 1.0
    %v188 = vrcp.pop %v187
    %v189 = vmul.f32 1.0, %v188
    %190 = vst [vmem:[#allocation7] sm:$0x1] %v189
    // Predicated region
    $region18: #{tpu_custom_call.1} parent=1 // pred_check
      _
    $region19: #{tpu_custom_call.1} parent=1 // pred_check_branch
      %192 = sbr.rel (0) target = $region21
    $region20: #{tpu_custom_call.1} parent=1 // pred_region
      %s194 = ssub.s32 16, 16
      %195 = vsyncadd [#allocation4], %s194
      %s197 = sshll.u32 [#allocation7], 4
      %s198 = int_to_ptr.vmem [resolvable:$true] %s197
      %200 = dma.vmem_to_hbm [thread:$0]  %s198, 16, %s2, [#allocation4]
    $region21: #{tpu_custom_call.1} parent=1 // pred_fallthru
      _
    // Predicated region
    $region22: #{tpu_custom_call.1} parent=1 // pred_check
      _
    $region23: #{tpu_custom_call.1} parent=1 // pred_check_branch
      %202 = sbr.rel (0) target = $region25
    $region24: #{tpu_custom_call.1} parent=1 // pred_region
      %203 = dma.done [#allocation4], 16
    $region25: #{tpu_custom_call.1} parent=1 // pred_fallthru
      _
    %204 = vsyncpa [#allocation3], 1
    %205 = vsyncpa [#allocation4], 1
    %206 = vsyncpa [#allocation5], 1

</llo_original>
